<compile_context>
chip_gen: v7x
topology: tpu7x:2x2x1
jax: 0.10.0
libtpu: 0.0.40
codegen_flags: <defaults>
</compile_context>

<pallas_src>
import jax
import jax.numpy as jnp
from jax import lax
from jax.experimental import pallas as pl
from jax.experimental.pallas import tpu as pltpu

EPS = 1e-5  # PyTorch nn.LayerNorm default


def prenorm_kernel(x_ref, g_ref, b_ref, w_ref, wb_ref, o_ref, y_ref):
    """One (row-tile, col-tile) grid step.

    Columns are the inner ("arbitrary") axis.  The normalized activations for
    the current row tile are computed once (col == 0) into the bf16 VMEM
    scratch y_ref and reused for every column tile of the output projection.
    """
    @pl.when(pl.program_id(1) == 0)
    def _():
        x = x_ref[...].astype(jnp.float32)                        # (TR, D)
        inv_d = 1.0 / x.shape[-1]
        mean = jnp.sum(x, axis=-1, keepdims=True) * inv_d
        xc = x - mean
        var = jnp.sum(xc * xc, axis=-1, keepdims=True) * inv_d    # biased (PyTorch)
        y = xc * lax.rsqrt(var + EPS)
        y = y * g_ref[...].astype(jnp.float32) + b_ref[...].astype(jnp.float32)
        y_ref[...] = y.astype(jnp.bfloat16)

    out = jnp.dot(y_ref[...], w_ref[...],                         # bf16 MXU operands
                  preferred_element_type=jnp.float32)             # f32 accumulation
    o_ref[...] = (out + wb_ref[...].astype(jnp.float32)).astype(o_ref.dtype)


def _vmem_capacity_bytes():
    try:
        cap = getattr(pltpu.get_tpu_info(), "vmem_capacity_bytes", None)
        if cap:
            return int(cap)
    except Exception:
        pass
    return 64 * 1024 * 1024  # conservative fallback (v7x per-core VMEM)


def _vmem_estimate(tr, tn, D, xb, ob):
    # Double-buffered pipeline tiles + bf16 y scratch + f32 LN working set.
    tiles = tr * D * xb + tr * tn * ob + D * tn * 2 + (2 * D + tn) * 4
    scratch = tr * D * 2
    f32_work = 4 * tr * D * 4 + tr * tn * 4
    return 2 * tiles + scratch + f32_work


def prenorm(x, gamma, beta, w, wb, *, row_tile=1024, col_tile=None):
    """Fused LayerNorm(dim) + Linear(dim, dim_out).

    x: (B, N, D); gamma/beta: (1, D); w: (D, DO) (pass bf16 to avoid a
    per-call cast); wb: (1, DO).  Returns (B, N, DO) in x.dtype.
    """
    B, N, D = x.shape
    DO = w.shape[1]
    R = B * N
    x2 = x.reshape(R, D)

    if w.dtype != jnp.bfloat16:
        # TODO(synk): hoist this cast into the caller / parameter store in real use.
        w = w.astype(jnp.bfloat16)

    # Lane-dense output stores: pad DO to a multiple of 128 (sliced off after).
    DO_pad = pl.cdiv(DO, 128) * 128
    if DO_pad != DO:
        w = jnp.pad(w, ((0, 0), (0, DO_pad - DO)))
        wb = jnp.pad(wb, ((0, 0), (0, DO_pad - DO)))

    xb = x.dtype.itemsize
    ob = x.dtype.itemsize

    cap = _vmem_capacity_bytes()
    budget = int(cap * 0.60)   # what the tile estimate may consume
    limit = int(cap * 0.85)    # compiler limit: leave headroom for internal scratch

    # Column tile: full DO if the weight fits (stays resident for the whole
    # kernel); otherwise the largest 128-multiple divisor of DO_pad that fits.
    if col_tile is not None:
        assert col_tile % 128 == 0 and DO_pad % col_tile == 0
        tn = col_tile
    else:
        tn = 128
        for cand in [DO_pad] + [t for t in (2048, 1024, 512, 256, 128)
                                if t < DO_pad and DO_pad % t == 0]:
            if _vmem_estimate(min(row_tile, 256), cand, D, xb, ob) <= budget:
                tn = cand
                break

    # Row tile: as large as requested, shrunk to the budget, sublane-aligned.
    tr = max(8, min(row_tile, pl.cdiv(R, 8) * 8))
    while tr > 64 and _vmem_estimate(tr, tn, D, xb, ob) > budget:
        tr //= 2
    tr = max(8, tr - (tr % 8))

    grid = (pl.cdiv(R, tr), DO_pad // tn)   # rows outer, out-cols inner

    out = pl.pallas_call(
        prenorm_kernel,
        out_shape=jax.ShapeDtypeStruct((R, DO_pad), x.dtype),
        grid_spec=pltpu.PrefetchScalarGridSpec(
            num_scalar_prefetch=0,
            grid=grid,
            in_specs=[
                pl.BlockSpec((tr, D), lambda i, j: (i, 0)),   # x rows (resident over j)
                pl.BlockSpec((1, D), lambda i, j: (0, 0)),    # gamma
                pl.BlockSpec((1, D), lambda i, j: (0, 0)),    # beta
                pl.BlockSpec((D, tn), lambda i, j: (0, j)),   # fn weight (bf16)
                pl.BlockSpec((1, tn), lambda i, j: (0, j)),   # fn bias
            ],
            out_specs=pl.BlockSpec((tr, tn), lambda i, j: (i, j)),
            scratch_shapes=[pltpu.VMEM((tr, D), jnp.bfloat16)],  # normalized-y cache
        ),
        compiler_params=pltpu.CompilerParams(
            dimension_semantics=("parallel", "arbitrary"),
            vmem_limit_bytes=limit),
    )(x2, gamma, beta, w, wb)

    if DO_pad != DO:
        out = out[:, :DO]
    return out.reshape(B, N, DO)


def prenorm_ref(x, gamma, beta, w, wb):
    # Reference mirrors the kernel's numerics (f32 LN stats, bf16 matmul
    # operands, f32 accumulation) so the comparison is tight.
    xf = x.astype(jnp.float32)
    mean = jnp.mean(xf, axis=-1, keepdims=True)
    var = jnp.mean((xf - mean) ** 2, axis=-1, keepdims=True)
    y = (xf - mean) * lax.rsqrt(var + EPS)
    y = y * gamma[0].astype(jnp.float32) + beta[0].astype(jnp.float32)
    out = jnp.dot(y.astype(jnp.bfloat16), w.astype(jnp.bfloat16),
                  preferred_element_type=jnp.float32) + wb[0].astype(jnp.float32)
    return out.astype(x.dtype)


if __name__ == "__main__":
    key = jax.random.PRNGKey(0)

    # --- case 1: small canonical ViG-like shape (dim = 128) -----------------
    B, N, D = 2, 8, 128
    kx, kg, kb, kw, kwb, key = jax.random.split(key, 6)
    x = jax.random.normal(kx, (B, N, D), dtype=jnp.float32)
    gamma = 1.0 + 0.01 * jax.random.normal(kg, (1, D), dtype=jnp.float32)
    beta = 0.01 * jax.random.normal(kb, (1, D), dtype=jnp.float32)
    w = (jax.random.normal(kw, (D, D), dtype=jnp.float32) / jnp.sqrt(D)
         ).astype(jnp.bfloat16)                      # weight cast hoisted out of call
    wb = 0.01 * jax.random.normal(kwb, (1, D), dtype=jnp.float32)

    out = jax.block_until_ready(prenorm(x, gamma, beta, w, wb))
    ref = prenorm_ref(x, gamma, beta, w, wb)
    assert out.shape == (B, N, D)
    assert jnp.allclose(out, ref, atol=2e-3, rtol=2e-3)

    # --- case 2: ragged rows + multi row/col tiles (boundary masking +
    #             normalized-y scratch reuse across column tiles) ------------
    B2, N2, D2, DO2 = 2, 100, 256, 256
    kx, kg, kb, kw, kwb, key = jax.random.split(key, 6)
    x2 = jax.random.normal(kx, (B2, N2, D2), dtype=jnp.float32)
    g2 = 1.0 + 0.01 * jax.random.normal(kg, (1, D2), dtype=jnp.float32)
    b2 = 0.01 * jax.random.normal(kb, (1, D2), dtype=jnp.float32)
    w2 = (jax.random.normal(kw, (D2, DO2), dtype=jnp.float32) / jnp.sqrt(D2)
          ).astype(jnp.bfloat16)
    wb2 = 0.01 * jax.random.normal(kwb, (1, DO2), dtype=jnp.float32)

    out2 = jax.block_until_ready(
        prenorm(x2, g2, b2, w2, wb2, row_tile=128, col_tile=128))
    ref2 = prenorm_ref(x2, g2, b2, w2, wb2)
    assert out2.shape == (B2, N2, DO2)
    assert jnp.allclose(out2, ref2, atol=2e-3, rtol=2e-3)

    # --- case 3: DO not a multiple of 128 (lane-dense column padding) -------
    B3, N3, D3, DO3 = 2, 8, 128, 192
    kx, kg, kb, kw, kwb, key = jax.random.split(key, 6)
    x3 = jax.random.normal(kx, (B3, N3, D3), dtype=jnp.float32)
    g3 = 1.0 + 0.01 * jax.random.normal(kg, (1, D3), dtype=jnp.float32)
    b3 = 0.01 * jax.random.normal(kb, (1, D3), dtype=jnp.float32)
    w3 = (jax.random.normal(kw, (D3, DO3), dtype=jnp.float32) / jnp.sqrt(D3)
          ).astype(jnp.bfloat16)
    wb3 = 0.01 * jax.random.normal(kwb, (1, DO3), dtype=jnp.float32)

    out3 = jax.block_until_ready(prenorm(x3, g3, b3, w3, wb3))
    ref3 = prenorm_ref(x3, g3, b3, w3, wb3)
    assert out3.shape == (B3, N3, DO3)
    assert jnp.allclose(out3, ref3, atol=2e-3, rtol=2e-3)

    print("KERNEL_OK")
</pallas_src>

<mosaic_0001>
module attributes {stable_mosaic.version = 11 : i64} {
  func.func @prenorm_kernel(%arg0: i32, %arg1: i32, %arg2: memref<16x128xf32, #tpu.memory_space<vmem>>, %arg3: memref<1x128xf32, #tpu.memory_space<vmem>>, %arg4: memref<1x128xf32, #tpu.memory_space<vmem>>, %arg5: memref<128x128xbf16, #tpu.memory_space<vmem>>, %arg6: memref<1x128xf32, #tpu.memory_space<vmem>>, %arg7: memref<16x128xf32, #tpu.memory_space<vmem>>, %arg8: memref<16x128xbf16, #tpu.memory_space<vmem>>) attributes {dimension_semantics = [#tpu.dimension_semantics<parallel>, #tpu.dimension_semantics<arbitrary>], iteration_bounds = array<i64: 1, 1>, scalar_prefetch = 0 : i64, scratch_operands = 1 : i64, tpu.core_type = #tpu.core_type<tc>, window_params = [{transform_indices = @transform_0, window_bounds = array<i64: 16, 128>}, {pipeline_mode = #tpu.pipeline_mode<synchronous>, transform_indices = @transform_1, window_bounds = array<i64: 1, 128>}, {pipeline_mode = #tpu.pipeline_mode<synchronous>, transform_indices = @transform_2, window_bounds = array<i64: 1, 128>}, {transform_indices = @transform_3, window_bounds = array<i64: 128, 128>}, {transform_indices = @transform_4, window_bounds = array<i64: 1, 128>}, {transform_indices = @transform_5, window_bounds = array<i64: 16, 128>}]} {
    %c0_i32 = arith.constant 0 : i32
    %0 = arith.cmpi eq, %arg1, %c0_i32 : i32
    %1 = arith.extui %0 : i1 to i32
    %c0_i32_0 = arith.constant 0 : i32
    %2 = arith.cmpi ne, %1, %c0_i32_0 : i32
    scf.if %2 {
      %c0_8 = arith.constant 0 : index
      %c0_9 = arith.constant 0 : index
      %10 = vector.load %arg2[%c0_8, %c0_9] : memref<16x128xf32, #tpu.memory_space<vmem>>, vector<16x128xf32>
      %cst_10 = arith.constant dense<0.000000e+00> : vector<16xf32>
      %11 = vector.multi_reduction <add>, %10, %cst_10 [1] : vector<16x128xf32> to vector<16xf32>
      %12 = vector.shape_cast %11 : vector<16xf32> to vector<16x1xf32>
      %cst_11 = arith.constant 7.812500e-03 : f32
      %13 = vector.broadcast %cst_11 : f32 to vector<16x1xf32>
      %14 = arith.mulf %12, %13 : vector<16x1xf32>
      %15 = vector.broadcast %14 : vector<16x1xf32> to vector<16x128xf32>
      %16 = arith.subf %10, %15 : vector<16x128xf32>
      %17 = arith.mulf %16, %16 : vector<16x128xf32>
      %cst_12 = arith.constant dense<0.000000e+00> : vector<16xf32>
      %18 = vector.multi_reduction <add>, %17, %cst_12 [1] : vector<16x128xf32> to vector<16xf32>
      %19 = vector.shape_cast %18 : vector<16xf32> to vector<16x1xf32>
      %cst_13 = arith.constant 7.812500e-03 : f32
      %20 = vector.broadcast %cst_13 : f32 to vector<16x1xf32>
      %21 = arith.mulf %19, %20 : vector<16x1xf32>
      %cst_14 = arith.constant 9.99999974E-6 : f32
      %22 = vector.broadcast %cst_14 : f32 to vector<16x1xf32>
      %23 = arith.addf %21, %22 : vector<16x1xf32>
      %24 = math.rsqrt %23 : vector<16x1xf32>
      %25 = vector.broadcast %24 : vector<16x1xf32> to vector<16x128xf32>
      %26 = arith.mulf %16, %25 : vector<16x128xf32>
      %c0_15 = arith.constant 0 : index
      %c0_16 = arith.constant 0 : index
      %27 = vector.load %arg3[%c0_15, %c0_16] : memref<1x128xf32, #tpu.memory_space<vmem>>, vector<1x128xf32>
      %28 = vector.broadcast %27 : vector<1x128xf32> to vector<16x128xf32>
      %29 = arith.mulf %26, %28 : vector<16x128xf32>
      %c0_17 = arith.constant 0 : index
      %c0_18 = arith.constant 0 : index
      %30 = vector.load %arg4[%c0_17, %c0_18] : memref<1x128xf32, #tpu.memory_space<vmem>>, vector<1x128xf32>
      %31 = vector.broadcast %30 : vector<1x128xf32> to vector<16x128xf32>
      %32 = arith.addf %29, %31 : vector<16x128xf32>
      %33 = arith.truncf %32 : vector<16x128xf32> to vector<16x128xbf16>
      %c0_19 = arith.constant 0 : index
      %c0_20 = arith.constant 0 : index
      %34 = vector.load %arg8[%c0_19, %c0_20] : memref<16x128xbf16, #tpu.memory_space<vmem>>, vector<16x128xbf16>
      tpu.vector_store %arg8[%c0_19, %c0_20], %33 {strides = array<i32>} : memref<16x128xbf16, #tpu.memory_space<vmem>>, vector<16x128xbf16>,
    } else {
    }
    %c0 = arith.constant 0 : index
    %c0_1 = arith.constant 0 : index
    %3 = vector.load %arg8[%c0, %c0_1] : memref<16x128xbf16, #tpu.memory_space<vmem>>, vector<16x128xbf16>
    %c0_2 = arith.constant 0 : index
    %c0_3 = arith.constant 0 : index
    %4 = vector.load %arg5[%c0_2, %c0_3] : memref<128x128xbf16, #tpu.memory_space<vmem>>, vector<128x128xbf16>
    %cst = arith.constant dense<0.000000e+00> : vector<16x128xf32>
    %5 = tpu.matmul %3, %4, %cst {dimension_numbers = #tpu.dot_dimension_numbers<[1], [0], [0], [1], [0, 0, 1, 1], [], []>} : vector<16x128xbf16>, vector<128x128xbf16>, vector<16x128xf32> -> vector<16x128xf32>
    %c0_4 = arith.constant 0 : index
    %c0_5 = arith.constant 0 : index
    %6 = vector.load %arg6[%c0_4, %c0_5] : memref<1x128xf32, #tpu.memory_space<vmem>>, vector<1x128xf32>
    %7 = vector.broadcast %6 : vector<1x128xf32> to vector<16x128xf32>
    %8 = arith.addf %5, %7 : vector<16x128xf32>
    %c0_6 = arith.constant 0 : index
    %c0_7 = arith.constant 0 : index
    %9 = vector.load %arg7[%c0_6, %c0_7] : memref<16x128xf32, #tpu.memory_space<vmem>>, vector<16x128xf32>
    tpu.vector_store %arg7[%c0_6, %c0_7], %8 {strides = array<i32>} : memref<16x128xf32, #tpu.memory_space<vmem>>, vector<16x128xf32>,
    return
  }
  func.func @transform_0(%arg0: i32, %arg1: i32) -> (i32, i32) {
    %c0_i32 = arith.constant 0 : i32
    %c0_i32_0 = arith.constant 0 : i32
    return %arg0, %c0_i32 : i32, i32
  }
  func.func @transform_1(%arg0: i32, %arg1: i32) -> (i32, i32) {
    %c0_i32 = arith.constant 0 : i32
    %c0_i32_0 = arith.constant 0 : i32
    %c0_i32_1 = arith.constant 0 : i32
    return %c0_i32, %c0_i32_0 : i32, i32
  }
  func.func @transform_2(%arg0: i32, %arg1: i32) -> (i32, i32) {
    %c0_i32 = arith.constant 0 : i32
    %c0_i32_0 = arith.constant 0 : i32
    %c0_i32_1 = arith.constant 0 : i32
    return %c0_i32, %c0_i32_0 : i32, i32
  }
  func.func @transform_3(%arg0: i32, %arg1: i32) -> (i32, i32) {
    %c0_i32 = arith.constant 0 : i32
    %c0_i32_0 = arith.constant 0 : i32
    return %c0_i32, %arg1 : i32, i32
  }
  func.func @transform_4(%arg0: i32, %arg1: i32) -> (i32, i32) {
    %c0_i32 = arith.constant 0 : i32
    %c0_i32_0 = arith.constant 0 : i32
    return %c0_i32, %arg1 : i32, i32
  }
  func.func @transform_5(%arg0: i32, %arg1: i32) -> (i32, i32) {
    %c0_i32 = arith.constant 0 : i32
    return %arg0, %arg1 : i32, i32
  }
}

</mosaic_0001>

<llo_original>
// kernel: tpu_custom_call.1
$region0: #{tpu_custom_call.1}
  #allocation0 [shape = 'u32[]', space=smem, size = 0x4, offset = 0x4, fixed_abs, tag = 'smem constant byte address 0x4 - core index']
  #allocation1 [shape = 'u32[144,128]{1,0:T(1,128)}', space=vmem, size = 0x12000, scoped, tag = 'internal scratch']
  #allocation2 [shape = 'bf16[16,128]{1,0:T(16,128)(2,1)}', space=vmem, size = 0x1000, scoped, tag = 'scratch operand']
  %s0 = inlined_call_operand.hbm [shape: f32[16,128], index: 0, kind: input, shape index: {}]
  %s1 = inlined_call_operand.vmem [shape: f32[1,128], index: 1, kind: input, shape index: {}]
  %s2 = inlined_call_operand.vmem [shape: f32[1,128], index: 2, kind: input, shape index: {}]
  %s3 = inlined_call_operand.hbm [shape: bf16[128,128], index: 3, kind: input, shape index: {}]
  %s4 = inlined_call_operand.vmem [shape: f32[1,128], index: 4, kind: input, shape index: {}]
  %s5 = inlined_call_operand.hbm [shape: f32[16,128], index: 5, kind: output, shape index: {}]
  %s6 = sld [smem:[#allocation0]]
  $region42: #{tpu_custom_call.1} parent=0
    _
  %s8 = ssub.s32 1, %s6
  %s9 = scalar_select 0, %s8, %s6
  $region1: #{tpu_custom_call.1} parent=0
    #allocation3 [shape = 'u8[8192]{0}', space=vmem, size = 0x2000, scoped, tag = 'input window, operand 0, single buffered']
    #allocation4 [shape = 's32[1]{0}', space=sflag, size = 0x4, scoped, tag = 'scoped memory for tpu_custom_call.1']
    #allocation5 [shape = 's32[1]{0}', space=sflag, size = 0x4, scoped, tag = 'scoped memory for tpu_custom_call.1']
    #allocation6 [shape = 'u8[32768]{0}', space=vmem, size = 0x8000, scoped, tag = 'input window, operand 3, single buffered']
    #allocation7 [shape = 's32[1]{0}', space=sflag, size = 0x4, scoped, tag = 'scoped memory for tpu_custom_call.1']
    #allocation8 [shape = 'u8[8192]{0}', space=vmem, size = 0x2000, scoped, tag = 'output window, operand 0, single buffered']
    %10 = vsyncpa [#allocation4], 0
    %11 = vsyncpa [#allocation7], 0
    %12 = vsyncpa [#allocation5], 0
    // Predicated region
    $region2: #{tpu_custom_call.1} parent=1 // pred_check
      _
    $region3: #{tpu_custom_call.1} parent=1 // pred_check_branch
      %14 = sbr.rel (0) target = $region5
    $region4: #{tpu_custom_call.1} parent=1 // pred_region
      %s16 = ssub.s32 256, 256
      %17 = vsyncadd [#allocation4], %s16
      %s18 = sshll.u32 [#allocation3], 4
      %s19 = int_to_ptr.vmem [resolvable:$true] %s18
      %24 = dma.hbm_to_vmem [thread:$0]  %s0, 256, %s19, [#allocation4], 128, 128, 8
    $region5: #{tpu_custom_call.1} parent=1 // pred_fallthru
      _
    // Predicated region
    $region6: #{tpu_custom_call.1} parent=1 // pred_check
      _
    $region7: #{tpu_custom_call.1} parent=1 // pred_check_branch
      %26 = sbr.rel (0) target = $region9
    $region8: #{tpu_custom_call.1} parent=1 // pred_region
      _
    $region9: #{tpu_custom_call.1} parent=1 // pred_fallthru
      _
    // Predicated region
    $region10: #{tpu_custom_call.1} parent=1 // pred_check
      _
    $region11: #{tpu_custom_call.1} parent=1 // pred_check_branch
      %28 = sbr.rel (0) target = $region13
    $region12: #{tpu_custom_call.1} parent=1 // pred_region
      _
    $region13: #{tpu_custom_call.1} parent=1 // pred_fallthru
      _
    // Predicated region
    $region14: #{tpu_custom_call.1} parent=1 // pred_check
      _
    $region15: #{tpu_custom_call.1} parent=1 // pred_check_branch
      %30 = sbr.rel (0) target = $region17
    $region16: #{tpu_custom_call.1} parent=1 // pred_region
      %s32 = ssub.s32 1024, 1024
      %33 = vsyncadd [#allocation7], %s32
      %s34 = sshll.u32 [#allocation6], 4
      %s35 = int_to_ptr.vmem [resolvable:$true] %s34
      %40 = dma.hbm_to_vmem [thread:$0]  %s3, 1024, %s35, [#allocation7], 64, 64, 4
    $region17: #{tpu_custom_call.1} parent=1 // pred_fallthru
      _
    // Predicated region
    $region18: #{tpu_custom_call.1} parent=1 // pred_check
      _
    $region19: #{tpu_custom_call.1} parent=1 // pred_check_branch
      %42 = sbr.rel (0) target = $region21
    $region20: #{tpu_custom_call.1} parent=1 // pred_region
      _
    $region21: #{tpu_custom_call.1} parent=1 // pred_fallthru
      _
    // Predicated region
    $region22: #{tpu_custom_call.1} parent=1 // pred_check
      _
    $region23: #{tpu_custom_call.1} parent=1 // pred_check_branch
      %44 = sbr.rel (0) target = $region25
    $region24: #{tpu_custom_call.1} parent=1 // pred_region
      %45 = dma.done [#allocation4], 256
    $region25: #{tpu_custom_call.1} parent=1 // pred_fallthru
      _
    // Predicated region
    $region26: #{tpu_custom_call.1} parent=1 // pred_check
      _
    $region27: #{tpu_custom_call.1} parent=1 // pred_check_branch
      %47 = sbr.rel (0) target = $region29
    $region28: #{tpu_custom_call.1} parent=1 // pred_region
      %48 = dma.done [#allocation7], 1024
    $region29: #{tpu_custom_call.1} parent=1 // pred_fallthru
      _
    %p50 = scmp.eq.s32.totalorder 0, 0
    // Predicated region
    $region30: #{tpu_custom_call.1} parent=1 // pred_check
      %p51 = pneg %p50
    $region31: #{tpu_custom_call.1} parent=1 // pred_check_branch
      %53 = sbr.rel (%p51) target = $region33
    $region32: #{tpu_custom_call.1} parent=1 // pred_region
      %v54 = vld [vmem:[#allocation3] sm:$0xff]
      %v55 = vld [vmem:[#allocation3 + $0x8] sm:$0xff]
      %56 = vadd.xlane.f32.xlu0 %v54
      %v57 = vpop.xlane.xlu0 %56
      %58 = vadd.xlane.f32.xlu0 %v55
      %v59 = vpop.xlane.xlu0 %58
      %v60 = vmul.f32 %v57, 0.0078125
      %v61 = vmul.f32 %v59, 0.0078125
      %v62 = vsub.f32 %v54, %v60
      %v63 = vsub.f32 %v55, %v61
      %v64 = vmul.f32 %v62, %v62
      %v65 = vmul.f32 %v63, %v63
      %66 = vadd.xlane.f32.xlu0 %v64
      %v67 = vpop.xlane.xlu0 %66
      %68 = vadd.xlane.f32.xlu0 %v65
      %v69 = vpop.xlane.xlu0 %68
      %v70 = vmul.f32 %v67, 0.0078125
      %v71 = vmul.f32 %v69, 0.0078125
      %v72 = vadd.f32 %v70, 1e-05
      %v73 = vadd.f32 %v71, 1e-05
      %v74 = vrsqrt.pop %v72
      %v75 = vrsqrt.pop %v73
      %v76 = vmul.f32 %v62, %v74
      %v77 = vmul.f32 %v63, %v75
      %v78 = vld [vmem:[%s1] sm:$0x1]
      %v80 = vlaneseq
      %v81 = vshrl.u32 %v80, 7
      %v82 = vsub.s32 0, %v81
      %v83 = vrot.slane %v78, %v82
      %v85 = vmul.f32 %v76, %v83
      %v86 = vmul.f32 %v77, %v83
      %v87 = vld [vmem:[%s2] sm:$0x1]
      %v89 = vlaneseq
      %v90 = vshrl.u32 %v89, 7
      %v91 = vsub.s32 0, %v90
      %v92 = vrot.slane %v87, %v91
      %v94 = vadd.f32 %v85, %v92
      %v95 = vadd.f32 %v86, %v92
      %v96 = vpack.c.bf16 %v95, %v94
      %97 = vst [vmem:[#allocation2] sm:$0xff] %v96
    $region33: #{tpu_custom_call.1} parent=1 // pred_fallthru
      _
    %v98 = vld [vmem:[#allocation2] sm:$0xff]
    %v99 = vld [vmem:[#allocation6] sm:$0xf]
    %v100 = vld [vmem:[#allocation6 + $0x4] sm:$0xf]
    %v101 = vld [vmem:[#allocation6 + $0x8] sm:$0xf]
    %v102 = vld [vmem:[#allocation6 + $0xc] sm:$0xf]
    %v103 = vld [vmem:[#allocation6 + $0x10] sm:$0xf]
    %v104 = vld [vmem:[#allocation6 + $0x14] sm:$0xf]
    %v105 = vld [vmem:[#allocation6 + $0x18] sm:$0xf]
    %v106 = vld [vmem:[#allocation6 + $0x1c] sm:$0xf]
    %v107 = vld [vmem:[#allocation6 + $0x20] sm:$0xf]
    %v108 = vld [vmem:[#allocation6 + $0x24] sm:$0xf]
    %v109 = vld [vmem:[#allocation6 + $0x28] sm:$0xf]
    %v110 = vld [vmem:[#allocation6 + $0x2c] sm:$0xf]
    %v111 = vld [vmem:[#allocation6 + $0x30] sm:$0xf]
    %v112 = vld [vmem:[#allocation6 + $0x34] sm:$0xf]
    %v113 = vld [vmem:[#allocation6 + $0x38] sm:$0xf]
    %v114 = vld [vmem:[#allocation6 + $0x3c] sm:$0xf]
    %v115 = vld [vmem:[%s4] sm:$0x1]
    %v117 = vlaneseq
    %v118 = vshrl.u32 %v117, 7
    %v119 = vsub.s32 0, %v118
    %v120 = vrot.slane %v115, %v119
    %v138 = vunpack.c.l.b16 %v99
    %v139 = vunpack.c.l.b16 %v100
    %v140 = vunpack.c.l.b16 %v101
    %v141 = vunpack.c.l.b16 %v102
    %v142 = vunpack.c.l.b16 %v103
    %v143 = vunpack.c.l.b16 %v104
    %v144 = vunpack.c.l.b16 %v105
    %v145 = vunpack.c.l.b16 %v106
    %v146 = vunpack.c.l.b16 %v107
    %v147 = vunpack.c.l.b16 %v108
    %v148 = vunpack.c.l.b16 %v109
    %v149 = vunpack.c.l.b16 %v110
    %v150 = vunpack.c.l.b16 %v111
    %v151 = vunpack.c.l.b16 %v112
    %v152 = vunpack.c.l.b16 %v113
    %v153 = vunpack.c.l.b16 %v114
    %v154 = vpack.c.b16 %v139, %v138
    %v155 = vpack.c.b16 %v141, %v140
    %v156 = vpack.c.b16 %v143, %v142
    %v157 = vpack.c.b16 %v145, %v144
    %v158 = vpack.c.b16 %v147, %v146
    %v159 = vpack.c.b16 %v149, %v148
    %v160 = vpack.c.b16 %v151, %v150
    %v161 = vpack.c.b16 %v153, %v152
    %170 = vmatprep.subr.bf16.mxu0 0
    %171 = vmatpush1.bf16.msra.mxu0 %v154
    %172 = vmatprep.subr.bf16.mxu0 0
    %173 = vmatpush1.bf16.msra.mxu0 %v155
    %174 = vmatprep.subr.bf16.mxu0 0
    %175 = vmatpush1.bf16.msra.mxu0 %v156
    %176 = vmatprep.subr.bf16.mxu0 0
    %177 = vmatpush1.bf16.msra.mxu0 %v157
    %178 = vmatprep.subr.bf16.mxu0 0
    %179 = vmatpush1.bf16.msra.mxu0 %v158
    %180 = vmatprep.subr.bf16.mxu0 0
    %181 = vmatpush1.bf16.msra.mxu0 %v159
    %182 = vmatprep.subr.bf16.mxu0 0
    %183 = vmatpush1.bf16.msra.mxu0 %v160
    %184 = vmatprep.subr.bf16.mxu0 0
    %185 = vmatpush1.bf16.msra.mxu0 %v161
    %186 = vmatprep.subr.bf16.mxu0 0
    %187 = vmatpush1.bf16.msra.mxu0 0
    %188 = vmatprep.subr.bf16.mxu0 0
    %189 = vmatpush1.bf16.msra.mxu0 0
    %190 = vmatprep.subr.bf16.mxu0 0
    %191 = vmatpush1.bf16.msra.mxu0 0
    %192 = vmatprep.subr.bf16.mxu0 0
    %193 = vmatpush1.bf16.msra.mxu0 0
    %194 = vmatprep.subr.bf16.mxu0 0
    %195 = vmatpush1.bf16.msra.mxu0 0
    %196 = vmatprep.subr.bf16.mxu0 0
    %197 = vmatpush1.bf16.msra.mxu0 0
    %198 = vmatprep.subr.bf16.mxu0 0
    %199 = vmatpush1.bf16.msra.mxu0 0
    %200 = vmatprep.subr.bf16.mxu0 0
    %201 = vmatpush1.bf16.msra.mxu0 0
    %202 = vmatprep.mubr.bf16.mxu0 0
    %203 = vmatmul.mubr.bf16.gmra.mrb[0].mxu0 %v98
    %v204 = vpop.f32.mrb[0].mxu0
    %v205 = vadd.f32 %v120, %v204
    %v206 = vpop.f32.mrb[0].mxu0
    %v207 = vpop.f32.mrb[0].mxu0
    %v208 = vadd.f32 %v120, %v207
    %v209 = vpop.f32.mrb[0].mxu0
    %210 = vdwg.mxu0
    %211 = vst [vmem:[#allocation8] sm:$0xff] %v205
    %212 = vst [vmem:[#allocation8 + $0x8] sm:$0xff] %v208
    // Predicated region
    $region34: #{tpu_custom_call.1} parent=1 // pred_check
      _
    $region35: #{tpu_custom_call.1} parent=1 // pred_check_branch
      %214 = sbr.rel (0) target = $region37
    $region36: #{tpu_custom_call.1} parent=1 // pred_region
      %s216 = ssub.s32 256, 256
      %217 = vsyncadd [#allocation5], %s216
      %s218 = sshll.u32 [#allocation8], 4
      %s219 = int_to_ptr.vmem [resolvable:$true] %s218
      %224 = dma.vmem_to_hbm [thread:$0]  %s219, 256, %s5, [#allocation5], 128, 128, 8
    $region37: #{tpu_custom_call.1} parent=1 // pred_fallthru
      _
    // Predicated region
    $region38: #{tpu_custom_call.1} parent=1 // pred_check
      _
    $region39: #{tpu_custom_call.1} parent=1 // pred_check_branch
      %226 = sbr.rel (0) target = $region41
    $region40: #{tpu_custom_call.1} parent=1 // pred_region
      %227 = dma.done [#allocation5], 256
    $region41: #{tpu_custom_call.1} parent=1 // pred_fallthru
      _
    %228 = vsyncpa [#allocation4], 1
    %229 = vsyncpa [#allocation7], 1
    %230 = vsyncpa [#allocation5], 1

</llo_original>
